<compile_context>
chip_gen: v5e
topology: v5e:2x2
jax: 0.10.0
libtpu: 0.0.40
codegen_flags: <defaults>
</compile_context>

<pallas_src>
import functools

import jax
import jax.numpy as jnp
from jax.experimental import pallas as pl
from jax.experimental.pallas import tpu as pltpu


def _round_up(x, m):
    return ((x + m - 1) // m) * m


def _pick_hidden_chunk(hidden, requested):
    """Largest divisor of `hidden` that is a multiple of 256 (then 128) and
    <= requested; falls back to the full hidden dim."""
    requested = min(int(requested), hidden)
    if requested >= hidden:
        return hidden
    for align in (256, 128):
        t = (requested // align) * align
        while t >= align:
            if hidden % t == 0:
                return t
            t -= align
    return hidden


def _default_vmem_limit():
    # Generation-aware scoped-VMEM limit with headroom (v7x: 64 MiB/TC,
    # v5e/v6e: 128 MiB).  Falls back to a conservative value off-TPU.
    try:
        cap = pltpu.get_tpu_info().vmem_capacity_bytes
        return min(int(cap * 0.85), 110 * 1024 * 1024)
    except Exception:
        return 48 * 1024 * 1024


def _ffn_kernel(*refs, apply_dropout):
    # refs (apply_dropout=False):
    #   x_ref   (tm, in_dim)      activations, native dtype (cast in-kernel)
    #   w1t_ref (in_dim, th)      lin1.weight^T chunk, matmul dtype
    #   b1_ref  (1, th)           f32
    #   w2t_ref (th, out_dim)     lin2.weight^T chunk, matmul dtype
    #   b2_ref  (1, out_dim)      f32
    #   o_ref   (tm, out_dim)     output tile
    #   acc_ref (tm, out_dim)     f32 scratch, resident across the hidden axis
    # apply_dropout=True inserts drop_ref (tm, out_dim) f32 before o_ref.
    if apply_dropout:
        x_ref, w1t_ref, b1_ref, w2t_ref, b2_ref, drop_ref, o_ref, acc_ref = refs
    else:
        x_ref, w1t_ref, b1_ref, w2t_ref, b2_ref, o_ref, acc_ref = refs
        drop_ref = None

    # program_id / num_programs only at top level (safe on every backend).
    h_idx = pl.program_id(1)
    n_h = pl.num_programs(1)

    @pl.when(h_idx == 0)
    def _init():
        acc_ref[...] = jnp.zeros_like(acc_ref)

    md = w1t_ref.dtype

    # lin1 chunk: canonical (M,K)x(K,N) dot; weights pre-transposed in wrapper.
    h = jnp.dot(x_ref[...].astype(md), w1t_ref[...],
                preferred_element_type=jnp.float32)
    h = jnp.maximum(h + b1_ref[...], 0.0)            # bias + ReLU in f32

    # lin2 partial: accumulate into the resident f32 accumulator.
    acc_ref[...] += jnp.dot(h.astype(md), w2t_ref[...],
                            preferred_element_type=jnp.float32)

    @pl.when(h_idx == n_h - 1)
    def _finalize():
        y = acc_ref[...] + b2_ref[...]
        if apply_dropout:
            y = y * drop_ref[...]                    # inverted-dropout scale
        o_ref[...] = y.astype(o_ref.dtype)


def transformer_ffn(x, w1, b1, w2, b2, *, dropout_p=0.0, training=False,
                    rng_key=None, tm=1024, th=512,
                    matmul_dtype=jnp.bfloat16, vmem_limit_bytes=None):
    """Forward pass of TransformerFFN.

    x:  (..., in_dim)
    w1: (dim_hidden, in_dim), b1: (dim_hidden,)   -- PyTorch nn.Linear layout
    w2: (out_dim, dim_hidden), b2: (out_dim,)
    Returns (..., out_dim) with x.dtype.

    Dropout uses a JAX RNG stream (not PyTorch's); mask is drawn once per
    output element in the wrapper and applied in-kernel after the full
    hidden reduction (inverted dropout, exactly like F.dropout semantics).
    """
    orig_shape = x.shape
    in_dim = orig_shape[-1]
    hidden = w1.shape[0]
    out_dim = w2.shape[0]
    assert w1.shape == (hidden, in_dim) and b1.shape == (hidden,)
    assert w2.shape == (out_dim, hidden) and b2.shape == (out_dim,)

    xm = x.reshape(-1, in_dim)                 # [tokens, in_dim]
    M = xm.shape[0]

    if vmem_limit_bytes is None:
        vmem_limit_bytes = _default_vmem_limit()

    # --- token tile: big enough to amortize weight re-streaming -------------
    tm = max(16, min(int(tm), _round_up(M, 16)))
    # v7x megacore: the parallel (token) axis is sharded across 2 TensorCores,
    # so for medium/large M make sure there are at least 2 token tiles.
    if M >= 512 and _round_up(M, 16) <= tm:
        tm = max(16, _round_up((M + 1) // 2, 16))

    # --- hidden chunk (lane dim of w2^T block rows => multiple of 128) ------
    th = _pick_hidden_chunk(hidden, th)

    # --- shrink tm until the double-buffered working set fits the VMEM budget
    md_bytes = jnp.dtype(matmul_dtype).itemsize
    x_bytes = jnp.dtype(x.dtype).itemsize

    def _working_set(tm_, th_):
        return (2 * tm_ * in_dim * x_bytes        # x tile (double-buffered)
                + 2 * in_dim * th_ * md_bytes     # w1^T chunk
                + 2 * th_ * out_dim * md_bytes    # w2^T chunk
                + 2 * tm_ * out_dim * x_bytes     # output tile
                + 2 * tm_ * out_dim * 4           # dropout scale (worst case)
                + tm_ * out_dim * 4               # f32 accumulator
                + tm_ * th_ * 4)                  # intermediate h tile (f32)

    budget = int(0.8 * vmem_limit_bytes)
    while tm > 16 and _working_set(tm, th) > budget:
        tm = max(16, _round_up(tm // 2, 16))

    Mp = _round_up(M, tm)
    if Mp != M:
        xm = jnp.pad(xm, ((0, Mp - M), (0, 0)))
    n_h = hidden // th

    # One-time transposes + casts in the wrapper (amortized over token tiles);
    # x stays in its native dtype and is cast per-tile inside the kernel.
    w1t = w1.T.astype(matmul_dtype)            # (in_dim, hidden)
    w2t = w2.T.astype(matmul_dtype)            # (hidden, out_dim)
    b1_r = b1.reshape(1, hidden).astype(jnp.float32)
    b2_r = b2.reshape(1, out_dim).astype(jnp.float32)

    apply_dropout = bool(training) and float(dropout_p) > 0.0

    inputs = [xm, w1t, b1_r, w2t, b2_r]
    in_specs = [
        pl.BlockSpec((tm, in_dim),    lambda i, h: (i, 0)),
        pl.BlockSpec((in_dim, th),    lambda i, h: (0, h)),
        pl.BlockSpec((1, th),         lambda i, h: (0, h)),
        pl.BlockSpec((th, out_dim),   lambda i, h: (h, 0)),
        pl.BlockSpec((1, out_dim),    lambda i, h: (0, 0)),
    ]
    if apply_dropout:
        if rng_key is None:
            rng_key = jax.random.PRNGKey(0)
        keep = jax.random.bernoulli(rng_key, 1.0 - float(dropout_p), (M, out_dim))
        scale = keep.astype(jnp.float32) * (1.0 / (1.0 - float(dropout_p)))
        if Mp != M:
            scale = jnp.pad(scale, ((0, Mp - M), (0, 0)))
        inputs.append(scale)
        in_specs.append(pl.BlockSpec((tm, out_dim), lambda i, h: (i, 0)))

    kernel = functools.partial(_ffn_kernel, apply_dropout=apply_dropout)

    out = pl.pallas_call(
        kernel,
        out_shape=jax.ShapeDtypeStruct((Mp, out_dim), x.dtype),
        grid_spec=pltpu.PrefetchScalarGridSpec(
            num_scalar_prefetch=0,
            grid=(Mp // tm, n_h),                # token axis first, reduction last
            in_specs=in_specs,
            out_specs=pl.BlockSpec((tm, out_dim), lambda i, h: (i, 0)),
            scratch_shapes=[pltpu.VMEM((tm, out_dim), jnp.float32)],
        ),
        compiler_params=pltpu.CompilerParams(
            dimension_semantics=("parallel", "arbitrary"),
            vmem_limit_bytes=int(vmem_limit_bytes)),
    )(*inputs)

    out = out[:M]
    return out.reshape(*orig_shape[:-1], out_dim)


if __name__ == "__main__":
    # Module config (small): in_dim=32, dim_hidden=64, out_dim=32, dropout=0.1
    in_dim, dim_hidden, out_dim, dropout = 32, 64, 32, 0.1
    batch, seq = 2, 8

    key = jax.random.PRNGKey(0)
    kx, kw1, kb1, kw2, kb2 = jax.random.split(key, 5)

    # Deterministic parameter init (PyTorch Linear layout: (out, in)).
    bound1 = 1.0 / (in_dim ** 0.5)
    bound2 = 1.0 / (dim_hidden ** 0.5)
    w1 = jax.random.uniform(kw1, (dim_hidden, in_dim), jnp.float32, -bound1, bound1)
    b1 = jax.random.uniform(kb1, (dim_hidden,), jnp.float32, -bound1, bound1)
    w2 = jax.random.uniform(kw2, (out_dim, dim_hidden), jnp.float32, -bound2, bound2)
    b2 = jax.random.uniform(kb2, (out_dim,), jnp.float32, -bound2, bound2)

    x = jax.random.normal(kx, (batch, seq, in_dim), jnp.float32)

    # Pure-JAX reference (eval path; dropout is identity when training=False).
    ref = jnp.maximum(x @ w1.T + b1, 0.0) @ w2.T + b2

    # 1) f32 MXU path: tight check against the reference.
    y32 = transformer_ffn(x, w1, b1, w2, b2, dropout_p=dropout, training=False,
                          matmul_dtype=jnp.float32)
    y32 = jax.block_until_ready(y32)
    assert y32.shape == (batch, seq, out_dim)
    assert jnp.allclose(y32, ref, atol=1e-5, rtol=1e-5)

    # 2) bf16 MXU path (default perf config): loose check.
    ybf = transformer_ffn(x, w1, b1, w2, b2, dropout_p=dropout, training=False)
    ybf = jax.block_until_ready(ybf)
    assert ybf.shape == (batch, seq, out_dim)
    assert jnp.allclose(ybf, ref, atol=5e-2, rtol=5e-2)

    # 3) Training path (dropout active, f32 matmul): every element is either
    #    exactly dropped (0) or equals ref / (1 - p).
    ytr = transformer_ffn(x, w1, b1, w2, b2, dropout_p=dropout, training=True,
                          rng_key=jax.random.PRNGKey(123),
                          matmul_dtype=jnp.float32)
    ytr = jax.block_until_ready(ytr)
    scaled = ref / (1.0 - dropout)
    ok = jnp.abs(ytr) < 1e-12
    ok = ok | (jnp.abs(ytr - scaled) < 1e-4)
    assert bool(jnp.all(ok))

    print("KERNEL_OK")
</pallas_src>

<mosaic_0001>
module attributes {stable_mosaic.version = 11 : i64} {
  func.func @_ffn_kernel(%arg0: i32, %arg1: i32, %arg2: memref<16x32xf32, #tpu.memory_space<vmem>>, %arg3: memref<32x64xf32, #tpu.memory_space<vmem>>, %arg4: memref<1x64xf32, #tpu.memory_space<vmem>>, %arg5: memref<64x32xf32, #tpu.memory_space<vmem>>, %arg6: memref<1x32xf32, #tpu.memory_space<vmem>>, %arg7: memref<16x32xf32, #tpu.memory_space<vmem>>, %arg8: memref<16x32xf32, #tpu.memory_space<vmem>>) attributes {dimension_semantics = [#tpu.dimension_semantics<parallel>, #tpu.dimension_semantics<arbitrary>], iteration_bounds = array<i64: 1, 1>, scalar_prefetch = 0 : i64, scratch_operands = 1 : i64, tpu.core_type = #tpu.core_type<tc>, window_params = [{transform_indices = @transform_0, window_bounds = array<i64: 16, 32>}, {transform_indices = @transform_1, window_bounds = array<i64: 32, 64>}, {transform_indices = @transform_2, window_bounds = array<i64: 1, 64>}, {transform_indices = @transform_3, window_bounds = array<i64: 64, 32>}, {pipeline_mode = #tpu.pipeline_mode<synchronous>, transform_indices = @transform_4, window_bounds = array<i64: 1, 32>}, {transform_indices = @transform_5, window_bounds = array<i64: 16, 32>}]} {
    %c0_i32 = arith.constant 0 : i32
    %0 = arith.cmpi eq, %arg1, %c0_i32 : i32
    %1 = arith.extui %0 : i1 to i32
    %c0_i32_0 = arith.constant 0 : i32
    %2 = arith.cmpi ne, %1, %c0_i32_0 : i32
    scf.if %2 {
      %cst_16 = arith.constant 0.000000e+00 : f32
      %19 = vector.broadcast %cst_16 : f32 to vector<16x32xf32>
      %c0_17 = arith.constant 0 : index
      %c0_18 = arith.constant 0 : index
      %20 = vector.load %arg8[%c0_17, %c0_18] : memref<16x32xf32, #tpu.memory_space<vmem>>, vector<16x32xf32>
      tpu.vector_store %arg8[%c0_17, %c0_18], %19 {strides = array<i32>} : memref<16x32xf32, #tpu.memory_space<vmem>>, vector<16x32xf32>,
    } else {
    }
    %c0 = arith.constant 0 : index
    %c0_1 = arith.constant 0 : index
    %3 = vector.load %arg2[%c0, %c0_1] : memref<16x32xf32, #tpu.memory_space<vmem>>, vector<16x32xf32>
    %c0_2 = arith.constant 0 : index
    %c0_3 = arith.constant 0 : index
    %4 = vector.load %arg3[%c0_2, %c0_3] : memref<32x64xf32, #tpu.memory_space<vmem>>, vector<32x64xf32>
    %cst = arith.constant dense<0.000000e+00> : vector<16x64xf32>
    %5 = tpu.matmul %3, %4, %cst {dimension_numbers = #tpu.dot_dimension_numbers<[1], [0], [0], [1], [0, 0, 1, 1], [], []>} : vector<16x32xf32>, vector<32x64xf32>, vector<16x64xf32> -> vector<16x64xf32>
    %c0_4 = arith.constant 0 : index
    %c0_5 = arith.constant 0 : index
    %6 = vector.load %arg4[%c0_4, %c0_5] : memref<1x64xf32, #tpu.memory_space<vmem>>, vector<1x64xf32>
    %7 = vector.broadcast %6 : vector<1x64xf32> to vector<16x64xf32>
    %8 = arith.addf %5, %7 : vector<16x64xf32>
    %cst_6 = arith.constant 0.000000e+00 : f32
    %9 = vector.broadcast %cst_6 : f32 to vector<16x64xf32>
    %10 = arith.maximumf %8, %9 : vector<16x64xf32>
    %c0_7 = arith.constant 0 : index
    %c0_8 = arith.constant 0 : index
    %11 = vector.load %arg8[%c0_7, %c0_8] : memref<16x32xf32, #tpu.memory_space<vmem>>, vector<16x32xf32>
    %c0_9 = arith.constant 0 : index
    %c0_10 = arith.constant 0 : index
    %12 = vector.load %arg5[%c0_9, %c0_10] : memref<64x32xf32, #tpu.memory_space<vmem>>, vector<64x32xf32>
    %cst_11 = arith.constant dense<0.000000e+00> : vector<16x32xf32>
    %13 = tpu.matmul %10, %12, %cst_11 {dimension_numbers = #tpu.dot_dimension_numbers<[1], [0], [0], [1], [0, 0, 1, 1], [], []>} : vector<16x64xf32>, vector<64x32xf32>, vector<16x32xf32> -> vector<16x32xf32>
    %14 = arith.addf %11, %13 : vector<16x32xf32>
    %c0_12 = arith.constant 0 : index
    %c0_13 = arith.constant 0 : index
    %15 = vector.load %arg8[%c0_12, %c0_13] : memref<16x32xf32, #tpu.memory_space<vmem>>, vector<16x32xf32>
    tpu.vector_store %arg8[%c0_12, %c0_13], %14 {strides = array<i32>} : memref<16x32xf32, #tpu.memory_space<vmem>>, vector<16x32xf32>,
    %c0_i32_14 = arith.constant 0 : i32
    %16 = arith.cmpi eq, %arg1, %c0_i32_14 : i32
    %17 = arith.extui %16 : i1 to i32
    %c0_i32_15 = arith.constant 0 : i32
    %18 = arith.cmpi ne, %17, %c0_i32_15 : i32
    scf.if %18 {
      %c0_16 = arith.constant 0 : index
      %c0_17 = arith.constant 0 : index
      %19 = vector.load %arg8[%c0_16, %c0_17] : memref<16x32xf32, #tpu.memory_space<vmem>>, vector<16x32xf32>
      %c0_18 = arith.constant 0 : index
      %c0_19 = arith.constant 0 : index
      %20 = vector.load %arg6[%c0_18, %c0_19] : memref<1x32xf32, #tpu.memory_space<vmem>>, vector<1x32xf32>
      %21 = vector.broadcast %20 : vector<1x32xf32> to vector<16x32xf32>
      %22 = arith.addf %19, %21 : vector<16x32xf32>
      %c0_20 = arith.constant 0 : index
      %c0_21 = arith.constant 0 : index
      %23 = vector.load %arg7[%c0_20, %c0_21] : memref<16x32xf32, #tpu.memory_space<vmem>>, vector<16x32xf32>
      tpu.vector_store %arg7[%c0_20, %c0_21], %22 {strides = array<i32>} : memref<16x32xf32, #tpu.memory_space<vmem>>, vector<16x32xf32>,
    } else {
    }
    return
  }
  func.func @transform_0(%arg0: i32, %arg1: i32) -> (i32, i32) {
    %c0_i32 = arith.constant 0 : i32
    %c0_i32_0 = arith.constant 0 : i32
    return %arg0, %c0_i32 : i32, i32
  }
  func.func @transform_1(%arg0: i32, %arg1: i32) -> (i32, i32) {
    %c0_i32 = arith.constant 0 : i32
    %c0_i32_0 = arith.constant 0 : i32
    return %c0_i32, %arg1 : i32, i32
  }
  func.func @transform_2(%arg0: i32, %arg1: i32) -> (i32, i32) {
    %c0_i32 = arith.constant 0 : i32
    %c0_i32_0 = arith.constant 0 : i32
    return %c0_i32, %arg1 : i32, i32
  }
  func.func @transform_3(%arg0: i32, %arg1: i32) -> (i32, i32) {
    %c0_i32 = arith.constant 0 : i32
    %c0_i32_0 = arith.constant 0 : i32
    return %arg1, %c0_i32 : i32, i32
  }
  func.func @transform_4(%arg0: i32, %arg1: i32) -> (i32, i32) {
    %c0_i32 = arith.constant 0 : i32
    %c0_i32_0 = arith.constant 0 : i32
    %c0_i32_1 = arith.constant 0 : i32
    return %c0_i32, %c0_i32_0 : i32, i32
  }
  func.func @transform_5(%arg0: i32, %arg1: i32) -> (i32, i32) {
    %c0_i32 = arith.constant 0 : i32
    %c0_i32_0 = arith.constant 0 : i32
    return %arg0, %c0_i32 : i32, i32
  }
}

</mosaic_0001>

<llo_original>
// kernel: tpu_custom_call.1
$region0: #{tpu_custom_call.1}
  #allocation0 [shape = 'u32[]', space=smem, size = 0x4, offset = 0x4, fixed_abs, tag = 'smem constant byte address 0x4 - core index']
  #allocation1 [shape = 'u32[72,128]{1,0:T(1,128)}', space=vmem, size = 0x9000, scoped, tag = 'internal scratch']
  #allocation2 [shape = 'f32[16,32]{1,0:T(8,128)}', space=vmem, size = 0x2000, scoped, tag = 'scratch operand']
  %s0 = inlined_call_operand.vmem [shape: f32[16,32], index: 0, kind: input, shape index: {}]
  %s1 = inlined_call_operand.vmem [shape: f32[32,64], index: 1, kind: input, shape index: {}]
  %s2 = inlined_call_operand.vmem [shape: f32[1,64], index: 2, kind: input, shape index: {}]
  %s3 = inlined_call_operand.vmem [shape: f32[64,32], index: 3, kind: input, shape index: {}]
  %s4 = inlined_call_operand.vmem [shape: f32[1,32], index: 4, kind: input, shape index: {}]
  %s5 = inlined_call_operand.hbm [shape: f32[16,32], index: 5, kind: output, shape index: {}]
  %s6 = sld [smem:[#allocation0]]
  $region38: #{tpu_custom_call.1} parent=0
    _
  %s8 = ssub.s32 1, %s6
  %s9 = scalar_select 0, %s8, %s6
  $region1: #{tpu_custom_call.1} parent=0
    #allocation3 [shape = 'u8[8192]{0}', space=vmem, size = 0x2000, scoped, tag = 'output window, operand 0, single buffered']
    #allocation4 [shape = 's32[1]{0}', space=sflag, size = 0x4, scoped, tag = 'scoped memory for tpu_custom_call.1']
    %10 = vsyncpa [#allocation4], 0
    // Predicated region
    $region2: #{tpu_custom_call.1} parent=1 // pred_check
      _
    $region3: #{tpu_custom_call.1} parent=1 // pred_check_branch
      %12 = sbr.rel (0) target = $region5
    $region4: #{tpu_custom_call.1} parent=1 // pred_region
      _
    $region5: #{tpu_custom_call.1} parent=1 // pred_fallthru
      _
    // Predicated region
    $region6: #{tpu_custom_call.1} parent=1 // pred_check
      _
    $region7: #{tpu_custom_call.1} parent=1 // pred_check_branch
      %14 = sbr.rel (0) target = $region9
    $region8: #{tpu_custom_call.1} parent=1 // pred_region
      _
    $region9: #{tpu_custom_call.1} parent=1 // pred_fallthru
      _
    // Predicated region
    $region10: #{tpu_custom_call.1} parent=1 // pred_check
      _
    $region11: #{tpu_custom_call.1} parent=1 // pred_check_branch
      %16 = sbr.rel (0) target = $region13
    $region12: #{tpu_custom_call.1} parent=1 // pred_region
      _
    $region13: #{tpu_custom_call.1} parent=1 // pred_fallthru
      _
    // Predicated region
    $region14: #{tpu_custom_call.1} parent=1 // pred_check
      _
    $region15: #{tpu_custom_call.1} parent=1 // pred_check_branch
      %18 = sbr.rel (0) target = $region17
    $region16: #{tpu_custom_call.1} parent=1 // pred_region
      _
    $region17: #{tpu_custom_call.1} parent=1 // pred_fallthru
      _
    // Predicated region
    $region18: #{tpu_custom_call.1} parent=1 // pred_check
      _
    $region19: #{tpu_custom_call.1} parent=1 // pred_check_branch
      %20 = sbr.rel (0) target = $region21
    $region20: #{tpu_custom_call.1} parent=1 // pred_region
      _
    $region21: #{tpu_custom_call.1} parent=1 // pred_fallthru
      _
    %p21 = scmp.eq.s32.totalorder 0, 0
    // Predicated region
    $region22: #{tpu_custom_call.1} parent=1 // pred_check
      %p22 = pneg %p21
    $region23: #{tpu_custom_call.1} parent=1 // pred_check_branch
      %24 = sbr.rel (%p22) target = $region25
    $region24: #{tpu_custom_call.1} parent=1 // pred_region
      %vm25 = vcmask 261120
      %26 = vst.msk [vmem:[#allocation2] sm:$0xff] %vm25, 0.0
      %27 = vst.msk [vmem:[#allocation2 + $0x8] sm:$0xff] %vm25, 0.0
    $region25: #{tpu_custom_call.1} parent=1 // pred_fallthru
      _
    %v28 = vld [vmem:[%s0] sm:$0xff]
    %v29 = vld [vmem:[%s0 + $0x8] sm:$0xff]
    %v30 = vld [vmem:[%s1] sm:$0xff]
    %v31 = vld [vmem:[%s1 + $0x8] sm:$0xff]
    %v32 = vld [vmem:[%s1 + $0x10] sm:$0xff]
    %v33 = vld [vmem:[%s1 + $0x18] sm:$0xff]
    %v34 = vld [vmem:[%s2] sm:$0x1]
    %v36 = vperm.slane %v34, 0
    %vm38 = vcmask 261120
    %v40 = vsel %vm38, %v28, 0
    %v43 = vsel %vm38, %v29, 0
    %45 = vmatpush.msra.mxu0 0.0
    %46 = vmatpush.msra.mxu0 0.0
    %47 = vmatpush.msra.mxu0 0.0
    %48 = vmatpush.msra.mxu0 0.0
    %49 = vmatpush.msra.mxu0 0.0
    %50 = vmatpush.msra.mxu0 0.0
    %51 = vmatpush.msra.mxu0 0.0
    %52 = vmatpush.msra.mxu0 0.0
    %53 = vmatpush.msra.mxu0 0.0
    %54 = vmatpush.msra.mxu0 0.0
    %55 = vmatpush.msra.mxu0 0.0
    %56 = vmatpush.msra.mxu0 0.0
    %57 = vmatpush.msra.mxu0 %v33
    %58 = vmatpush.msra.mxu0 %v32
    %59 = vmatpush.msra.mxu0 %v31
    %60 = vmatpush.msra.mxu0 %v30
    %61 = vmatmul.f32.gmra.mxu0 %v40
    %v62 = vpop.f32.mrf.mxu0
    %v63 = vadd.f32 %v36, %v62
    %64 = vmatmul.f32.gmra.mxu0 %v43
    %v65 = vpop.f32.mrf.mxu0
    %v66 = vadd.f32 %v36, %v65
    %67 = vdwg.mxu0
    %v68 = vmax.f32 %v63, 0.0
    %v69 = vmax.f32 %v66, 0.0
    %v70 = vld [vmem:[#allocation2] sm:$0xff]
    %v71 = vld [vmem:[#allocation2 + $0x8] sm:$0xff]
    %v72 = vld [vmem:[%s3] sm:$0xff]
    %v73 = vld [vmem:[%s3 + $0x8] sm:$0xff]
    %v74 = vld [vmem:[%s3 + $0x10] sm:$0xff]
    %v75 = vld [vmem:[%s3 + $0x18] sm:$0xff]
    %v76 = vld [vmem:[%s3 + $0x20] sm:$0xff]
    %v77 = vld [vmem:[%s3 + $0x28] sm:$0xff]
    %v78 = vld [vmem:[%s3 + $0x30] sm:$0xff]
    %v79 = vld [vmem:[%s3 + $0x38] sm:$0xff]
    %vm80 = vcmask 523264
    %v82 = vsel %vm80, %v68, 0
    %v85 = vsel %vm80, %v69, 0
    %87 = vmatpush.msra.mxu0 0.0
    %88 = vmatpush.msra.mxu0 0.0
    %89 = vmatpush.msra.mxu0 0.0
    %90 = vmatpush.msra.mxu0 0.0
    %91 = vmatpush.msra.mxu0 0.0
    %92 = vmatpush.msra.mxu0 0.0
    %93 = vmatpush.msra.mxu0 0.0
    %94 = vmatpush.msra.mxu0 0.0
    %95 = vmatpush.msra.mxu0 %v79
    %96 = vmatpush.msra.mxu0 %v78
    %97 = vmatpush.msra.mxu0 %v77
    %98 = vmatpush.msra.mxu0 %v76
    %99 = vmatpush.msra.mxu0 %v75
    %100 = vmatpush.msra.mxu0 %v74
    %101 = vmatpush.msra.mxu0 %v73
    %102 = vmatpush.msra.mxu0 %v72
    %103 = vmatmul.f32.gmra.mxu0 %v82
    %v104 = vpop.f32.mrf.mxu0
    %v105 = vadd.f32 0.0, %v104
    %106 = vmatmul.f32.gmra.mxu0 %v85
    %v107 = vpop.f32.mrf.mxu0
    %v108 = vadd.f32 0.0, %v107
    %109 = vdwg.mxu0
    %v110 = vadd.f32 %v70, %v105
    %v111 = vadd.f32 %v71, %v108
    %112 = vst.msk [vmem:[#allocation2] sm:$0xff] %vm38, %v110
    %113 = vst.msk [vmem:[#allocation2 + $0x8] sm:$0xff] %vm38, %v111
    // Predicated region
    $region26: #{tpu_custom_call.1} parent=1 // pred_check
      %p114 = pneg %p21
    $region27: #{tpu_custom_call.1} parent=1 // pred_check_branch
      %116 = sbr.rel (%p114) target = $region29
    $region28: #{tpu_custom_call.1} parent=1 // pred_region
      %v117 = vld [vmem:[#allocation2] sm:$0xff]
      %v118 = vld [vmem:[#allocation2 + $0x8] sm:$0xff]
      %v119 = vld [vmem:[%s4] sm:$0x1]
      %v121 = vperm.slane %v119, 0
      %v123 = vadd.f32 %v117, %v121
      %v124 = vadd.f32 %v118, %v121
      %125 = vst.msk [vmem:[#allocation3] sm:$0xff] %vm38, %v123
      %126 = vst.msk [vmem:[#allocation3 + $0x8] sm:$0xff] %vm38, %v124
    $region29: #{tpu_custom_call.1} parent=1 // pred_fallthru
      _
    // Predicated region
    $region30: #{tpu_custom_call.1} parent=1 // pred_check
      _
    $region31: #{tpu_custom_call.1} parent=1 // pred_check_branch
      %128 = sbr.rel (0) target = $region33
    $region32: #{tpu_custom_call.1} parent=1 // pred_region
      %130 = vsyncadd [#allocation4], 0
      %s131 = sshll.u32 [#allocation3], 4
      %s132 = int_to_ptr.vmem [resolvable:$true] %s131
      %s133 = sshll.u32 %s5, 4
      %s134 = int_to_ptr.hbm [resolvable:$true] %s133
      %139 = dma.vmem_to_hbm [thread:$0]  %s132, 256, %s134, [#allocation4], 128, 128, 8
    $region33: #{tpu_custom_call.1} parent=1 // pred_fallthru
      _
    // Predicated region
    $region34: #{tpu_custom_call.1} parent=1 // pred_check
      _
    $region35: #{tpu_custom_call.1} parent=1 // pred_check_branch
      %141 = sbr.rel (0) target = $region37
    $region36: #{tpu_custom_call.1} parent=1 // pred_region
      %143 = dma.done [#allocation4], 256
    $region37: #{tpu_custom_call.1} parent=1 // pred_fallthru
      _
    %144 = vsyncpa [#allocation4], 1

</llo_original>
